<compile_context>
chip_gen: v7x
topology: tpu7x:2x2x1
jax: 0.10.0
libtpu: 0.0.40
codegen_flags: <defaults>
</compile_context>

<pallas_src>
import functools

import numpy as np
import jax
import jax.numpy as jnp
from jax import lax
from jax.experimental import pallas as pl
from jax.experimental.pallas import tpu as pltpu

TEMPERATURE = 0.1    # hp.temperature_loss
DISTRACTORS_K = 4    # hp.distractors_K
EPS = 1e-8           # nn.CosineSimilarity default eps


def _pretraining_loss_kernel(x_ref, y_ref, idx_ref, out_ref, *,
                             temperature, eps, d_on_lanes, strip):
    # Inputs arrive either as (Bb, T, D) [d_on_lanes=True: feature dim on the
    # 128-lane axis, used when T < 128] or (Bb, D, T) [original layout].
    x = x_ref[...].astype(jnp.float32)      # bf16 inputs upcast in-VMEM
    y = y_ref[...].astype(jnp.float32)
    idx = idx_ref[...]                      # (Bb, T, K+1) int32; -1 = unused slot

    red_axis = 2 if d_on_lanes else 1

    # --- cosine similarity along D (PyTorch nn.CosineSimilarity(dim=1)) -----
    dot = jnp.sum(x * y, axis=red_axis, keepdims=True)
    nx2 = jnp.sum(x * x, axis=red_axis, keepdims=True)
    ny2 = jnp.sum(y * y, axis=red_axis, keepdims=True)
    # PyTorch clamps the product of norms:
    #   cos = x.y / max(||x||*||y||, eps) == x.y * rsqrt(max(||x||^2*||y||^2, eps^2))
    cos = dot * lax.rsqrt(jnp.maximum(nx2 * ny2, eps * eps))
    e = jnp.exp(cos * (1.0 / temperature))

    # One O(T) XLU transpose gives e in both layouts (no (T,T) identity mask).
    if d_on_lanes:
        e_col = e                          # (Bb, T, 1)  sublane layout
        e_row = jnp.swapaxes(e, 1, 2)      # (Bb, 1, T)  lane layout
    else:
        e_row = e                          # (Bb, 1, T)
        e_col = jnp.swapaxes(e, 1, 2)      # (Bb, T, 1)

    bb, t, k1 = idx.shape

    # --- distractor denominator + ratio, strip-tiled over query positions ---
    # Intermediates are (Bb, strip, T) instead of (Bb, T, T), bounding VMEM
    # independently of T (needed on v7x's 64 MiB VMEM for large T).
    # TODO(synk): for very large T convert this static strip loop into a grid
    # axis (or an MXU mask-matmul with a dense int8 mask when T >> D).
    total = jnp.zeros((bb, 1, 1), jnp.float32)
    for i0 in range(0, t, strip):
        sz = min(strip, t - i0)
        idx_s = idx[:, i0:i0 + sz, :]                               # (Bb, sz, K+1)
        lane_pos = lax.broadcasted_iota(jnp.int32, (1, sz, t), 2)   # broadcasts over Bb
        # Fused select+accumulate: compare -> select e_row, no mask materialization.
        acc = jnp.where(lane_pos == idx_s[:, :, 0:1], e_row, 0.0)
        for k in range(1, k1):                                      # K+1 = 5, static unroll
            acc = acc + jnp.where(lane_pos == idx_s[:, :, k:k + 1], e_row, 0.0)
        distr = jnp.sum(acc, axis=2, keepdims=True)                 # (Bb, sz, 1)
        ratio = e_col[:, i0:i0 + sz, :] / distr                     # exact divide
        total = total + jnp.sum(ratio, axis=1, keepdims=True)
    out_ref[...] = total                                            # (Bb, 1, 1)


def _vmem_limit_bytes():
    """~75% of physical VMEM: ~96 MiB on v5e/v6e (128 MiB), ~48 MiB on v7x (64 MiB)."""
    try:
        cap = pltpu.get_tpu_info().vmem_capacity_bytes
    except Exception:
        cap = 64 * 1024 * 1024      # conservative (v7x-sized) fallback
    return (int(cap) * 3) // 4


def _pick_strip(T, cap_bytes=4 * 1024 * 1024):
    """Sublane strip so the (strip, T) select-accumulate stays under cap_bytes."""
    if T * T * 4 <= cap_bytes:
        return T
    s = (cap_bytes // (T * 4)) // 8 * 8
    return int(max(8, min(T, s)))


def _per_batch_vmem(D, T, K1, esize, strip):
    # Only BlockSpec'd inputs/outputs are double-buffered; intermediates are not.
    io = 2 * (2 * D * T * esize + T * K1 * 4)     # x, y, idx blocks (x2 buffers)
    interm = 2 * D * T * 4                        # f32 upcasts / elementwise temps
    interm += 2 * strip * T * 4                   # where-accumulate strip (+slack)
    interm += 16 * T * 4                          # e_row/e_col, dot, norms, distr
    return io + interm


def _pick_block_b(B, D, T, K1, esize, strip, budget_bytes):
    """Largest divisor of B fitting the VMEM budget, capped at B//2 so the
    'parallel' batch axis has >=2 grid steps (both v7x TensorCores busy;
    costs only one extra ~0.35us pipeline step on single-core v5e/v6e)."""
    per_b = _per_batch_vmem(D, T, K1, esize, strip)
    cap = B // 2 if B >= 2 else 1
    best = 1
    for bb in range(1, cap + 1):
        if B % bb == 0 and bb * per_b <= budget_bytes:
            best = bb
    return best


def pretraining_loss(logits, target, distractor_idx, *, temperature=TEMPERATURE,
                     block_b=None, strip=None, d_on_lanes=None):
    """Forward of PretrainingLoss.contrastive_loss (simplified_pretraining=True).

    logits, target: (B, D, T) float32 or bfloat16; distractor_idx: (B, T, K+1) int32.
    """
    # TODO(synk): pallas_call is not auto-differentiable; training use needs a
    # custom_vjp (backward can reuse e, distr and the norms as residuals).
    B, D, T = logits.shape
    K1 = distractor_idx.shape[-1]

    if d_on_lanes is None:
        d_on_lanes = T < 128          # put D on lanes when T underfills them
    if d_on_lanes:
        x = jnp.swapaxes(logits, 1, 2)    # (B, T, D): D lane-dense
        y = jnp.swapaxes(target, 1, 2)
        block3 = lambda bb: (bb, T, D)
    else:
        x, y = logits, target
        block3 = lambda bb: (bb, D, T)

    if strip is None:
        strip = _pick_strip(T)
    vmem_limit = _vmem_limit_bytes()
    if block_b is None:
        block_b = _pick_block_b(B, D, T, K1, x.dtype.itemsize, strip,
                                budget_bytes=(vmem_limit * 9) // 10)
    nb = B // block_b

    kern = functools.partial(_pretraining_loss_kernel,
                             temperature=float(temperature), eps=EPS,
                             d_on_lanes=bool(d_on_lanes), strip=int(strip))
    per_batch = pl.pallas_call(
        kern,
        out_shape=jax.ShapeDtypeStruct((B, 1, 1), jnp.float32),
        grid_spec=pltpu.PrefetchScalarGridSpec(
            num_scalar_prefetch=0,
            grid=(nb,),
            in_specs=[
                pl.BlockSpec(block3(block_b), lambda b: (b, 0, 0)),
                pl.BlockSpec(block3(block_b), lambda b: (b, 0, 0)),
                pl.BlockSpec((block_b, T, K1), lambda b: (b, 0, 0)),
            ],
            # Output is only B floats; (block_b,1,1) blocks keep last-two dims
            # equal to the full array dims (a lane-dense output would need a
            # 128-multiple last dim and is a negligible win here).
            out_specs=pl.BlockSpec((block_b, 1, 1), lambda b: (b, 0, 0)),
        ),
        compiler_params=pltpu.CompilerParams(
            dimension_semantics=("parallel",),     # independent per-batch partials
            vmem_limit_bytes=vmem_limit),
    )(x, y, distractor_idx)

    # mean over T, mean over B, then -log  (matches mean(-1) -> mean -> -log)
    return -jnp.log(jnp.sum(per_batch) / (B * T))


def build_distractor_indices(B, T, K, seed=0):
    """Deterministic replica of the torch.randperm distractor selection.

    idx[b, i, :] lists the positions whose exp-similarities are summed into the
    denominator for position i of batch element b; -1 marks an unused padding
    slot (only for i == T-1, which has no self-term in the PyTorch code).
    Note: not bit-for-bit identical to torch.randperm draws (deterministic glue).
    """
    rng = np.random.RandomState(seed)
    idx = np.full((B, T, K + 1), -1, dtype=np.int32)
    for b in range(B):
        for i in range(T):
            perm = rng.permutation(T - 1)            # randperm(T-1): values 0..T-2
            sel = list(perm[perm != i][:K])          # split(perm[perm != i], K)[0]
            if i < T - 1:                            # cat([..., perm[perm == i]])
                sel.append(i)
            idx[b, i, :len(sel)] = np.asarray(sel, dtype=np.int32)
    return idx


def reference_loss(logits, target, idx, temperature):
    """Plain-numpy (float64) reference mirroring the PyTorch forward."""
    x = np.asarray(logits, dtype=np.float64)
    y = np.asarray(target, dtype=np.float64)
    dot = (x * y).sum(1)
    nx = np.sqrt((x * x).sum(1))
    ny = np.sqrt((y * y).sum(1))
    cos = dot / np.maximum(nx * ny, EPS)             # PyTorch clamps the product
    e = np.exp(cos / temperature)                    # (B, T)
    B, T, K1 = idx.shape
    distr = np.zeros((B, T))
    for b in range(B):
        for i in range(T):
            for k in range(K1):
                j = idx[b, i, k]
                if j >= 0:
                    distr[b, i] += e[b, j]
    ratio = e / distr
    return -np.log(ratio.mean())


if __name__ == "__main__":
    B, D, T = 2, 32, 8
    key = jax.random.PRNGKey(0)
    k1, k2 = jax.random.split(key)
    logits = jax.random.normal(k1, (B, D, T), dtype=jnp.float32)
    target = jax.random.normal(k2, (B, D, T), dtype=jnp.float32)
    idx_np = build_distractor_indices(B, T, DISTRACTORS_K, seed=0)
    idx = jnp.asarray(idx_np)

    # TODO(synk): DiversityLoss (the non-simplified pretraining branch) is not
    # defined in the reference snippet; only hp.simplified_pretraining=True is implemented.

    loss = jax.block_until_ready(pretraining_loss(logits, target, idx))
    ref = reference_loss(logits, target, idx_np, TEMPERATURE)
    assert np.allclose(float(loss), float(ref), rtol=1e-3, atol=1e-5), (float(loss), float(ref))

    # bf16 input path (halves the HBM traffic of the cosine phase); inputs are
    # quantized so only a loose agreement with the f64 reference is expected.
    loss_bf16 = jax.block_until_ready(
        pretraining_loss(logits.astype(jnp.bfloat16), target.astype(jnp.bfloat16), idx))
    assert np.isfinite(float(loss_bf16))
    assert np.allclose(float(loss_bf16), float(ref), rtol=1e-1), (float(loss_bf16), float(ref))

    print("KERNEL_OK")
</pallas_src>

<mosaic_0001>
module attributes {stable_mosaic.version = 11 : i64} {
  func.func @_pretraining_loss_kernel(%arg0: i32, %arg1: memref<1x8x32xf32, #tpu.memory_space<vmem>>, %arg2: memref<1x8x32xf32, #tpu.memory_space<vmem>>, %arg3: memref<1x8x5xi32, #tpu.memory_space<vmem>>, %arg4: memref<1x1x1xf32, #tpu.memory_space<vmem>>) attributes {dimension_semantics = [#tpu.dimension_semantics<parallel>], iteration_bounds = array<i64: 2>, scalar_prefetch = 0 : i64, scratch_operands = 0 : i64, tpu.core_type = #tpu.core_type<tc>, window_params = [{transform_indices = @transform_0, window_bounds = array<i64: 1, 8, 32>}, {transform_indices = @transform_1, window_bounds = array<i64: 1, 8, 32>}, {transform_indices = @transform_2, window_bounds = array<i64: 1, 8, 5>}, {transform_indices = @transform_3, window_bounds = array<i64: 1, 1, 1>}]} {
    %c0 = arith.constant 0 : index
    %c0_0 = arith.constant 0 : index
    %c0_1 = arith.constant 0 : index
    %0 = vector.load %arg1[%c0, %c0_0, %c0_1] : memref<1x8x32xf32, #tpu.memory_space<vmem>>, vector<1x8x32xf32>
    %c0_2 = arith.constant 0 : index
    %c0_3 = arith.constant 0 : index
    %c0_4 = arith.constant 0 : index
    %1 = vector.load %arg2[%c0_2, %c0_3, %c0_4] : memref<1x8x32xf32, #tpu.memory_space<vmem>>, vector<1x8x32xf32>
    %c0_5 = arith.constant 0 : index
    %c0_6 = arith.constant 0 : index
    %c0_7 = arith.constant 0 : index
    %2 = vector.load %arg3[%c0_5, %c0_6, %c0_7] : memref<1x8x5xi32, #tpu.memory_space<vmem>>, vector<1x8x5xi32>
    %3 = arith.mulf %0, %1 : vector<1x8x32xf32>
    %cst = arith.constant dense<0.000000e+00> : vector<1x8xf32>
    %4 = vector.multi_reduction <add>, %3, %cst [2] : vector<1x8x32xf32> to vector<1x8xf32>
    %5 = vector.shape_cast %4 : vector<1x8xf32> to vector<1x8x1xf32>
    %6 = arith.mulf %0, %0 : vector<1x8x32xf32>
    %cst_8 = arith.constant dense<0.000000e+00> : vector<1x8xf32>
    %7 = vector.multi_reduction <add>, %6, %cst_8 [2] : vector<1x8x32xf32> to vector<1x8xf32>
    %8 = vector.shape_cast %7 : vector<1x8xf32> to vector<1x8x1xf32>
    %9 = arith.mulf %1, %1 : vector<1x8x32xf32>
    %cst_9 = arith.constant dense<0.000000e+00> : vector<1x8xf32>
    %10 = vector.multi_reduction <add>, %9, %cst_9 [2] : vector<1x8x32xf32> to vector<1x8xf32>
    %11 = vector.shape_cast %10 : vector<1x8xf32> to vector<1x8x1xf32>
    %12 = arith.mulf %8, %11 : vector<1x8x1xf32>
    %cst_10 = arith.constant 1.000000e-16 : f32
    %13 = vector.broadcast %cst_10 : f32 to vector<1x8x1xf32>
    %14 = arith.maximumf %12, %13 : vector<1x8x1xf32>
    %15 = math.rsqrt %14 : vector<1x8x1xf32>
    %16 = arith.mulf %5, %15 : vector<1x8x1xf32>
    %cst_11 = arith.constant 1.000000e+01 : f32
    %17 = vector.broadcast %cst_11 : f32 to vector<1x8x1xf32>
    %18 = arith.mulf %16, %17 : vector<1x8x1xf32>
    %19 = math.exp %18 : vector<1x8x1xf32>
    %20 = tpu.transpose %19, [0, 2, 1] : vector<1x8x1xf32> -> vector<1x1x8xf32>
    %cst_12 = arith.constant 0.000000e+00 : f32
    %21 = vector.broadcast %cst_12 : f32 to vector<1x1x1xf32>
    %22 = tpu.iota {dimensions = array<i32: 2>} : vector<1x8x8xi32>
    %23 = vector.extract_strided_slice %2 {offsets = [0, 0, 0], sizes = [1, 8, 1], strides = [1, 1, 1]} : vector<1x8x5xi32> to vector<1x8x1xi32>
    %24 = vector.broadcast %23 : vector<1x8x1xi32> to vector<1x8x8xi32>
    %25 = arith.cmpi eq, %22, %24 : vector<1x8x8xi32>
    %cst_13 = arith.constant 0.000000e+00 : f32
    %26 = vector.shape_cast %20 : vector<1x1x8xf32> to vector<1x1x8xf32>
    %27 = vector.broadcast %26 : vector<1x1x8xf32> to vector<1x8x8xf32>
    %28 = vector.broadcast %cst_13 : f32 to vector<1x8x8xf32>
    %29 = arith.select %25, %27, %28 : vector<1x8x8xi1>, vector<1x8x8xf32>
    %30 = vector.extract_strided_slice %2 {offsets = [0, 0, 1], sizes = [1, 8, 1], strides = [1, 1, 1]} : vector<1x8x5xi32> to vector<1x8x1xi32>
    %31 = vector.broadcast %30 : vector<1x8x1xi32> to vector<1x8x8xi32>
    %32 = arith.cmpi eq, %22, %31 : vector<1x8x8xi32>
    %cst_14 = arith.constant 0.000000e+00 : f32
    %33 = vector.shape_cast %20 : vector<1x1x8xf32> to vector<1x1x8xf32>
    %34 = vector.broadcast %33 : vector<1x1x8xf32> to vector<1x8x8xf32>
    %35 = vector.broadcast %cst_14 : f32 to vector<1x8x8xf32>
    %36 = arith.select %32, %34, %35 : vector<1x8x8xi1>, vector<1x8x8xf32>
    %37 = arith.addf %29, %36 : vector<1x8x8xf32>
    %38 = vector.extract_strided_slice %2 {offsets = [0, 0, 2], sizes = [1, 8, 1], strides = [1, 1, 1]} : vector<1x8x5xi32> to vector<1x8x1xi32>
    %39 = vector.broadcast %38 : vector<1x8x1xi32> to vector<1x8x8xi32>
    %40 = arith.cmpi eq, %22, %39 : vector<1x8x8xi32>
    %cst_15 = arith.constant 0.000000e+00 : f32
    %41 = vector.shape_cast %20 : vector<1x1x8xf32> to vector<1x1x8xf32>
    %42 = vector.broadcast %41 : vector<1x1x8xf32> to vector<1x8x8xf32>
    %43 = vector.broadcast %cst_15 : f32 to vector<1x8x8xf32>
    %44 = arith.select %40, %42, %43 : vector<1x8x8xi1>, vector<1x8x8xf32>
    %45 = arith.addf %37, %44 : vector<1x8x8xf32>
    %46 = vector.extract_strided_slice %2 {offsets = [0, 0, 3], sizes = [1, 8, 1], strides = [1, 1, 1]} : vector<1x8x5xi32> to vector<1x8x1xi32>
    %47 = vector.broadcast %46 : vector<1x8x1xi32> to vector<1x8x8xi32>
    %48 = arith.cmpi eq, %22, %47 : vector<1x8x8xi32>
    %cst_16 = arith.constant 0.000000e+00 : f32
    %49 = vector.shape_cast %20 : vector<1x1x8xf32> to vector<1x1x8xf32>
    %50 = vector.broadcast %49 : vector<1x1x8xf32> to vector<1x8x8xf32>
    %51 = vector.broadcast %cst_16 : f32 to vector<1x8x8xf32>
    %52 = arith.select %48, %50, %51 : vector<1x8x8xi1>, vector<1x8x8xf32>
    %53 = arith.addf %45, %52 : vector<1x8x8xf32>
    %54 = vector.extract_strided_slice %2 {offsets = [0, 0, 4], sizes = [1, 8, 1], strides = [1, 1, 1]} : vector<1x8x5xi32> to vector<1x8x1xi32>
    %55 = vector.broadcast %54 : vector<1x8x1xi32> to vector<1x8x8xi32>
    %56 = arith.cmpi eq, %22, %55 : vector<1x8x8xi32>
    %cst_17 = arith.constant 0.000000e+00 : f32
    %57 = vector.shape_cast %20 : vector<1x1x8xf32> to vector<1x1x8xf32>
    %58 = vector.broadcast %57 : vector<1x1x8xf32> to vector<1x8x8xf32>
    %59 = vector.broadcast %cst_17 : f32 to vector<1x8x8xf32>
    %60 = arith.select %56, %58, %59 : vector<1x8x8xi1>, vector<1x8x8xf32>
    %61 = arith.addf %53, %60 : vector<1x8x8xf32>
    %cst_18 = arith.constant dense<0.000000e+00> : vector<1x8xf32>
    %62 = vector.multi_reduction <add>, %61, %cst_18 [2] : vector<1x8x8xf32> to vector<1x8xf32>
    %63 = vector.shape_cast %62 : vector<1x8xf32> to vector<1x8x1xf32>
    %64 = arith.divf %19, %63 : vector<1x8x1xf32>
    %cst_19 = arith.constant dense<0.000000e+00> : vector<1x1xf32>
    %65 = vector.multi_reduction <add>, %64, %cst_19 [1] : vector<1x8x1xf32> to vector<1x1xf32>
    %66 = vector.shape_cast %65 : vector<1x1xf32> to vector<1x1x1xf32>
    %67 = arith.addf %21, %66 : vector<1x1x1xf32>
    %c0_20 = arith.constant 0 : index
    %c0_21 = arith.constant 0 : index
    %c0_22 = arith.constant 0 : index
    %68 = vector.load %arg4[%c0_20, %c0_21, %c0_22] : memref<1x1x1xf32, #tpu.memory_space<vmem>>, vector<1x1x1xf32>
    tpu.vector_store %arg4[%c0_20, %c0_21, %c0_22], %67 {strides = array<i32>} : memref<1x1x1xf32, #tpu.memory_space<vmem>>, vector<1x1x1xf32>,
    return
  }
  func.func @transform_0(%arg0: i32) -> (i32, i32, i32) {
    %c0_i32 = arith.constant 0 : i32
    %c0_i32_0 = arith.constant 0 : i32
    %c0_i32_1 = arith.constant 0 : i32
    return %arg0, %c0_i32, %c0_i32_0 : i32, i32, i32
  }
  func.func @transform_1(%arg0: i32) -> (i32, i32, i32) {
    %c0_i32 = arith.constant 0 : i32
    %c0_i32_0 = arith.constant 0 : i32
    %c0_i32_1 = arith.constant 0 : i32
    return %arg0, %c0_i32, %c0_i32_0 : i32, i32, i32
  }
  func.func @transform_2(%arg0: i32) -> (i32, i32, i32) {
    %c0_i32 = arith.constant 0 : i32
    %c0_i32_0 = arith.constant 0 : i32
    %c0_i32_1 = arith.constant 0 : i32
    return %arg0, %c0_i32, %c0_i32_0 : i32, i32, i32
  }
  func.func @transform_3(%arg0: i32) -> (i32, i32, i32) {
    %c0_i32 = arith.constant 0 : i32
    %c0_i32_0 = arith.constant 0 : i32
    %c0_i32_1 = arith.constant 0 : i32
    return %arg0, %c0_i32, %c0_i32_0 : i32, i32, i32
  }
}

</mosaic_0001>

<llo_original>
// kernel: tpu_custom_call.1
$region0: #{tpu_custom_call.1}
  #allocation0 [shape = 'u32[]', space=smem, size = 0x4, offset = 0x4, fixed_abs, tag = 'smem constant byte address 0x4 - core index']
  #allocation1 [shape = 'u32[144,128]{1,0:T(1,128)}', space=vmem, size = 0x12000, scoped, tag = 'internal scratch']
  %s0 = inlined_call_operand.vmem [shape: f32[2,8,32], index: 0, kind: input, shape index: {}]
  %s1 = inlined_call_operand.hbm [shape: f32[2,8,32], index: 1, kind: input, shape index: {}]
  %s2 = inlined_call_operand.vmem [shape: s32[2,8,5], index: 2, kind: input, shape index: {}]
  %s3 = inlined_call_operand.vmem [shape: f32[2,1,1], index: 3, kind: output, shape index: {}]
  %s4 = sld [smem:[#allocation0]]
  $region49: #{tpu_custom_call.1} parent=0
    _
  %s6 = ssub.s32 1, %s4
  %s7 = scalar_select 0, %s6, %s4
  $region1: #{tpu_custom_call.1} parent=0
    #allocation2 [shape = 'u8[8192]{0}', space=vmem, size = 0x2000, scoped, tag = 'input window, operand 1']
    #allocation3 [shape = 's32[2]{0}', space=sflag, size = 0x8, scoped, tag = 'scoped memory for tpu_custom_call.1']
    %8 = vsyncpa [#allocation3], 0
    %s9 = scalar_lea.sflag [#allocation3], 1
    %10 = vsyncpa %s9, 0
    loop: start=0, step=1, limit=4
    $region2: #{tpu_custom_call.1} parent=1 // loop_pre_header
      _
    $region3: #{tpu_custom_call.1} parent=1 // loop_header
      %s12 = sphi 0, %s16
      %p13 = scmp.ge.s32.totalorder %s12, 4
      %s22 = sphi 0, %s24
      %s25 = sphi 0, %s22
      %s26 = sphi 0, %s25
      %s42 = sphi 0, %s26
      %s48 = sphi 0, %s50
      %s51 = sphi 0, %s48
      %s52 = sphi 0, %s51
      %s68 = sphi 0, %s52
      %s74 = sphi 0, %s76
      %s77 = sphi 0, %s74
      %s78 = sphi 0, %s77
      %s94 = sphi 0, %s78
      %s100 = sphi 0, %s102
      %s103 = sphi 0, %s100
      %s104 = sphi 0, %s103
      %s120 = sphi 0, %s104
    $region4: #{tpu_custom_call.1} parent=1 // loop_header_branch
      %15 = sbr.rel (%p13) target = $region8
    $region5: #{tpu_custom_call.1} parent=1 // loop_body
      %s17 = ssub.s32 %s12, 1
      %s18 = ssub.s32 %s12, 2
      %s19 = sadd.s32 %s12, 1
      %s20 = ssub.s32 %s12, %s19
      %p21 = scmp.eq.s32.totalorder %s20, 0
      %s23 = sadd.s32 %s22, 1
      %s24 = scalar_select %p21, %s22, %s23
      %p27 = pneg %p21
      %p28 = scmp.eq.s32.totalorder %s12, 1
      %p29 = por %p27, %p28
      %p30 = scmp.ne.s32.totalorder %s22, %s25
      %p31 = scmp.eq.s32.totalorder %s12, 0
      %p32 = por %p30, %p31
      %p33 = scmp.ne.s32.totalorder %s22, %s25
      %p34 = scmp.eq.s32.totalorder %s17, 1
      %p35 = por %p33, %p34
      %p36 = scmp.ne.s32.totalorder %s25, %s26
      %p37 = scmp.eq.s32.totalorder %s17, 0
      %p38 = por %p36, %p37
      %p39 = scmp.ne.s32.totalorder %s25, %s26
      %p40 = scmp.eq.s32.totalorder %s18, 1
      %p41 = por %p39, %p40
      %p43 = scmp.ne.s32.totalorder %s26, %s42
      %p44 = scmp.eq.s32.totalorder %s18, 0
      %p45 = por %p43, %p44
      %s46 = ssub.s32 %s12, %s19
      %p47 = scmp.eq.s32.totalorder %s46, 0
      %s49 = sadd.s32 %s48, 1
      %s50 = scalar_select %p47, %s48, %s49
      %p53 = pneg %p47
      %p54 = scmp.eq.s32.totalorder %s12, 1
      %p55 = por %p53, %p54
      %p56 = scmp.ne.s32.totalorder %s48, %s51
      %p57 = scmp.eq.s32.totalorder %s12, 0
      %p58 = por %p56, %p57
      %p59 = scmp.ne.s32.totalorder %s48, %s51
      %p60 = scmp.eq.s32.totalorder %s17, 1
      %p61 = por %p59, %p60
      %p62 = scmp.ne.s32.totalorder %s51, %s52
      %p63 = scmp.eq.s32.totalorder %s17, 0
      %p64 = por %p62, %p63
      %p65 = scmp.ne.s32.totalorder %s51, %s52
      %p66 = scmp.eq.s32.totalorder %s18, 1
      %p67 = por %p65, %p66
      %p69 = scmp.ne.s32.totalorder %s52, %s68
      %p70 = scmp.eq.s32.totalorder %s18, 0
      %p71 = por %p69, %p70
      %s72 = ssub.s32 %s12, %s19
      %p73 = scmp.eq.s32.totalorder %s72, 0
      %s75 = sadd.s32 %s74, 1
      %s76 = scalar_select %p73, %s74, %s75
      %p79 = pneg %p73
      %p80 = scmp.eq.s32.totalorder %s12, 1
      %p81 = por %p79, %p80
      %p82 = scmp.ne.s32.totalorder %s74, %s77
      %p83 = scmp.eq.s32.totalorder %s12, 0
      %p84 = por %p82, %p83
      %p85 = scmp.ne.s32.totalorder %s74, %s77
      %p86 = scmp.eq.s32.totalorder %s17, 1
      %p87 = por %p85, %p86
      %p88 = scmp.ne.s32.totalorder %s77, %s78
      %p89 = scmp.eq.s32.totalorder %s17, 0
      %p90 = por %p88, %p89
      %p91 = scmp.ne.s32.totalorder %s77, %s78
      %p92 = scmp.eq.s32.totalorder %s18, 1
      %p93 = por %p91, %p92
      %p95 = scmp.ne.s32.totalorder %s78, %s94
      %p96 = scmp.eq.s32.totalorder %s18, 0
      %p97 = por %p95, %p96
      %s98 = ssub.s32 %s12, %s19
      %p99 = scmp.eq.s32.totalorder %s98, 0
      %s101 = sadd.s32 %s100, 1
      %s102 = scalar_select %p99, %s100, %s101
      %p105 = pneg %p99
      %p106 = scmp.eq.s32.totalorder %s12, 1
      %p107 = por %p105, %p106
      %p108 = scmp.ne.s32.totalorder %s100, %s103
      %p109 = scmp.eq.s32.totalorder %s12, 0
      %p110 = por %p108, %p109
      %p111 = scmp.ne.s32.totalorder %s100, %s103
      %p112 = scmp.eq.s32.totalorder %s17, 1
      %p113 = por %p111, %p112
      %p114 = scmp.ne.s32.totalorder %s103, %s104
      %p115 = scmp.eq.s32.totalorder %s17, 0
      %p116 = por %p114, %p115
      %p117 = scmp.ne.s32.totalorder %s103, %s104
      %p118 = scmp.eq.s32.totalorder %s18, 1
      %p119 = por %p117, %p118
      %p121 = scmp.ne.s32.totalorder %s104, %s120
      %p122 = scmp.eq.s32.totalorder %s18, 0
      %p123 = por %p121, %p122
      %p124 = scmp.le.s32.totalorder 1, %s12
      %p125 = scmp.lt.s32.totalorder %s12, 3
      %p126 = pnand %p124, %p125
      %p127 = pneg %p126
      // Predicated region
      $region9: #{tpu_custom_call.1} parent=5 // pred_check
        _
      $region10: #{tpu_custom_call.1} parent=5 // pred_check_branch
        %129 = sbr.rel (%p126) target = $region12
      $region11: #{tpu_custom_call.1} parent=5 // pred_region
        %s130 = ssub.s32 %s12, 1
      $region12: #{tpu_custom_call.1} parent=5 // pred_fallthru
        _
      %p131 = scmp.lt.s32.totalorder %s12, 2
      // Predicated region
      $region13: #{tpu_custom_call.1} parent=5 // pred_check
        %p132 = pneg %p131
      $region14: #{tpu_custom_call.1} parent=5 // pred_check_branch
        %134 = sbr.rel (%p132) target = $region16
      $region15: #{tpu_custom_call.1} parent=5 // pred_region
        // Predicated region
        $region17: #{tpu_custom_call.1} parent=15 // pred_check
          %p135 = pneg %p32
        $region18: #{tpu_custom_call.1} parent=15 // pred_check_branch
          %137 = sbr.rel (%p135) target = $region20
        $region19: #{tpu_custom_call.1} parent=15 // pred_region
          %p138 = scmp.lt.s32.totalorder %s12, 1
          %s139 = scalar_select %p138, %s12, 1
          %s140 = smul.addr %s139, 8
          %s141 = scalar_lea.vmem %s0, %s140
        $region20: #{tpu_custom_call.1} parent=15 // pred_fallthru
          _
        // Predicated region
        $region21: #{tpu_custom_call.1} parent=15 // pred_check
          %p142 = pneg %p58
        $region22: #{tpu_custom_call.1} parent=15 // pred_check_branch
          %144 = sbr.rel (%p142) target = $region24
        $region23: #{tpu_custom_call.1} parent=15 // pred_region
          %s145 = sand.u32 %s48, 1
          %s146 = scalar_lea.sflag [#allocation3], %s145
          %s147 = sand.u32 %s48, 1
          %s148 = smul.addr %s147, 8
          %s149 = scalar_lea.vmem [#allocation2], %s148
          %s151 = ssub.s32 128, 128
          %152 = vsyncadd %s146, %s151
          %s153 = smul.addr %s12, 128
          %s154 = scalar_lea.hbm %s1, %s153
          %s156 = sshll.u32 %s149, 4
          %s157 = int_to_ptr.vmem [resolvable:$true] %s156
          %159 = dma.hbm_to_vmem [thread:$0]  %s154, 128, %s157, %s146
        $region24: #{tpu_custom_call.1} parent=15 // pred_fallthru
          _
        // Predicated region
        $region25: #{tpu_custom_call.1} parent=15 // pred_check
          %p160 = pneg %p84
        $region26: #{tpu_custom_call.1} parent=15 // pred_check_branch
          %162 = sbr.rel (%p160) target = $region28
        $region27: #{tpu_custom_call.1} parent=15 // pred_region
          %p163 = scmp.lt.s32.totalorder %s12, 1
          %s164 = scalar_select %p163, %s12, 1
          %s165 = smul.addr %s164, 8
          %s166 = scalar_lea.vmem %s2, %s165
        $region28: #{tpu_custom_call.1} parent=15 // pred_fallthru
          _
      $region16: #{tpu_custom_call.1} parent=5 // pred_fallthru
        _
      %p167 = scmp.le.s32.totalorder 1, %s12
      %p168 = scmp.lt.s32.totalorder %s12, 3
      %p169 = pnand %p167, %p168
      %p170 = pneg %p169
      // Predicated region
      $region29: #{tpu_custom_call.1} parent=5 // pred_check
        _
      $region30: #{tpu_custom_call.1} parent=5 // pred_check_branch
        %172 = sbr.rel (%p169) target = $region32
      $region31: #{tpu_custom_call.1} parent=5 // pred_region
        %s173 = ssub.s32 %s12, 1
        %s174 = sand.u32 %s51, 1
        %s175 = scalar_lea.sflag [#allocation3], %s174
        %s176 = sand.u32 %s51, 1
        %s177 = smul.addr %s176, 8
        %s178 = scalar_lea.vmem [#allocation2], %s177
        // Predicated region
        $region33: #{tpu_custom_call.1} parent=31 // pred_check
          %p179 = pneg %p64
        $region34: #{tpu_custom_call.1} parent=31 // pred_check_branch
          %181 = sbr.rel (%p179) target = $region36
        $region35: #{tpu_custom_call.1} parent=31 // pred_region
          %182 = dma.done %s175, 128
        $region36: #{tpu_custom_call.1} parent=31 // pred_fallthru
          _
        %p183 = scmp.lt.s32.totalorder %s17, 1
        %s184 = scalar_select %p183, %s17, 1
        %s185 = smul.addr %s184, 8
        %s186 = scalar_lea.vmem %s0, %s185
        %p187 = pneg %p38
        %p188 = pneg %p35
        %s189 = sand.u32 %s51, 1
        %s190 = scalar_lea.sflag [#allocation3], %s189
        %s191 = sand.u32 %s51, 1
        %s192 = smul.addr %s191, 8
        %s193 = scalar_lea.vmem [#allocation2], %s192
        %p194 = pneg %p64
        %p195 = pneg %p61
        %p196 = scmp.lt.s32.totalorder %s17, 1
        %s197 = scalar_select %p196, %s17, 1
        %s198 = smul.addr %s197, 8
        %s199 = scalar_lea.vmem %s2, %s198
        %p200 = pneg %p90
        %p201 = pneg %p87
        %p202 = pneg %p116
        %p203 = pneg %p113
        %p204 = scmp.lt.s32.totalorder %s17, 1
        %s205 = scalar_select %p204, %s17, 1
        %s206 = scalar_lea.vmem %s3, %s205
        %p207 = scmp.lt.s32.totalorder %s17, 1
        %s208 = scalar_select %p207, %s17, 1
        %s209 = smul.addr %s208, 8
        %s210 = scalar_lea.vmem %s0, %s209
        %p211 = scmp.lt.s32.totalorder %s17, 1
        %s212 = scalar_select %p211, %s17, 1
        %s213 = smul.addr %s212, 8
        %s214 = scalar_lea.vmem %s2, %s213
        %p215 = scmp.lt.s32.totalorder %s17, 1
        %s216 = scalar_select %p215, %s17, 1
        %s217 = scalar_lea.vmem %s3, %s216
        %v218 = vld [vmem:[%s210] sm:$0xff]
        %v219 = vld [vmem:[%s178] sm:$0xff]
        %v220 = vld [vmem:[%s214] sm:$0xff]
        %v221 = vmul.f32 %v218, %v219
        %vm222 = vcmask 261120
        %v223 = vsel %vm222, %v221, 0.0
        %224 = vadd.xlane.f32.xlu0 %v223
        %v225 = vpop.xlane.xlu0 %224
        %v226 = vmul.f32 %v218, %v218
        %v227 = vsel %vm222, %v226, 0.0
        %228 = vadd.xlane.f32.xlu0 %v227
        %v229 = vpop.xlane.xlu0 %228
        %v230 = vmul.f32 %v219, %v219
        %v231 = vsel %vm222, %v230, 0.0
        %232 = vadd.xlane.f32.xlu0 %v231
        %v233 = vpop.xlane.xlu0 %232
        %v234 = vmul.f32 %v229, %v233
        %v235 = vmax.f32 %v234, 1e-16
        %v236 = vrsqrt.pop %v235
        %v237 = vmul.f32 %v225, %v236
        %v238 = vmul.f32 %v237, 10.0
        %v239 = vmul.f32 %v238, 1.442695
        %v240 = vpow.pop %v239
        %241 = vxpose.xlu0.b32.start [1/16] %v240, 128
        %242 = vxpose.xlu0.b32.cont [2/16] 0.0, 128
        %243 = vxpose.xlu0.b32.cont [3/16] 0.0, 128
        %244 = vxpose.xlu0.b32.cont [4/16] 0.0, 128
        %245 = vxpose.xlu0.b32.cont [5/16] 0.0, 128
        %246 = vxpose.xlu0.b32.cont [6/16] 0.0, 128
        %247 = vxpose.xlu0.b32.cont [7/16] 0.0, 128
        %248 = vxpose.xlu0.b32.cont [8/16] 0.0, 128
        %249 = vxpose.xlu0.b32.cont [9/16] 0.0, 128
        %250 = vxpose.xlu0.b32.cont [10/16] 0.0, 128
        %251 = vxpose.xlu0.b32.cont [11/16] 0.0, 128
        %252 = vxpose.xlu0.b32.cont [12/16] 0.0, 128
        %253 = vxpose.xlu0.b32.cont [13/16] 0.0, 128
        %254 = vxpose.xlu0.b32.cont [14/16] 0.0, 128
        %255 = vxpose.xlu0.b32.cont [15/16] 0.0, 128
        %256 = vxpose.xlu0.b32.end [16/16] 0.0, 128
        %v257 = vpop.trf.xlu0
        %v258 = vpop.trf.xlu0
        %v259 = vpop.trf.xlu0
        %v260 = vpop.trf.xlu0
        %v261 = vpop.trf.xlu0
        %v262 = vpop.trf.xlu0
        %v263 = vpop.trf.xlu0
        %v264 = vpop.trf.xlu0
        %v265 = vpop.trf.xlu0
        %v266 = vpop.trf.xlu0
        %v267 = vpop.trf.xlu0
        %v268 = vpop.trf.xlu0
        %v269 = vpop.trf.xlu0
        %v270 = vpop.trf.xlu0
        %v271 = vpop.trf.xlu0
        %v272 = vpop.trf.xlu0
        %v273 = vlaneseq
        %v274 = vand.u32 %v273, 127
        %275 = vset.pattern.permute.xlu0 0
        %276 = vperm.xlu0 %275, %v220
        %v277 = vpop.permute.xlu0 %276
        %vm278 = vcmp.eq.s32.totalorder %v274, %v277
        %v279 = vlaneseq
        %v280 = vshrl.u32 %v279, 7
        %v281 = vsub.s32 0, %v280
        %v282 = vrot.slane %v257, %v281
        %v283 = vsel %vm278, %v282, 0.0
        %284 = vset.pattern.permute.xlu0 1
        %285 = vperm.xlu0 %284, %v220
        %v286 = vpop.permute.xlu0 %285
        %vm287 = vcmp.eq.s32.totalorder %v274, %v286
        %v288 = vsel %vm287, %v282, 0.0
        %v289 = vadd.f32 %v283, %v288
        %290 = vset.pattern.permute.xlu0 2
        %291 = vperm.xlu0 %290, %v220
        %v292 = vpop.permute.xlu0 %291
        %vm293 = vcmp.eq.s32.totalorder %v274, %v292
        %v294 = vsel %vm293, %v282, 0.0
        %v295 = vadd.f32 %v289, %v294
        %296 = vset.pattern.permute.xlu0 3
        %297 = vperm.xlu0 %296, %v220
        %v298 = vpop.permute.xlu0 %297
        %vm299 = vcmp.eq.s32.totalorder %v274, %v298
        %v300 = vsel %vm299, %v282, 0.0
        %v301 = vadd.f32 %v295, %v300
        %302 = vset.pattern.permute.xlu0 4
        %303 = vperm.xlu0 %302, %v220
        %v304 = vpop.permute.xlu0 %303
        %vm305 = vcmp.eq.s32.totalorder %v274, %v304
        %v306 = vsel %vm305, %v282, 0.0
        %v307 = vadd.f32 %v301, %v306
        %vm308 = vcmask 64512
        %v309 = vsel %vm308, %v307, 0.0
        %310 = vadd.xlane.f32.xlu0 %v309
        %v311 = vpop.xlane.xlu0 %310
        %v312 = vrcp.pop %v311
        %v313 = vmul.f32 %v240, %v312
        %v314 = vrot.slane %v313, 4
        %v315 = vadd.f32 %v313, %v314
        %v316 = vrot.slane %v315, 2
        %v317 = vadd.f32 %v315, %v316
        %v318 = vrot.slane %v317, 1
        %v319 = vadd.f32 %v317, %v318
        %v320 = vadd.f32 %v319, 0.0
        %vm321 = vcmask 0
        %322 = vst.msk [vmem:[%s217] sm:$0x1] %vm321, %v320
        %p323 = scmp.lt.s32.totalorder %s17, 1
        %s324 = scalar_select %p323, %s17, 1
        %s325 = scalar_lea.vmem %s3, %s324
        // Predicated region
        $region37: #{tpu_custom_call.1} parent=31 // pred_check
          %p326 = pneg %p113
        $region38: #{tpu_custom_call.1} parent=31 // pred_check_branch
          %328 = sbr.rel (%p326) target = $region40
        $region39: #{tpu_custom_call.1} parent=31 // pred_region
          _
        $region40: #{tpu_custom_call.1} parent=31 // pred_fallthru
          _
      $region32: #{tpu_custom_call.1} parent=5 // pred_fallthru
        _
      %p329 = scmp.le.s32.totalorder 2, %s12
      // Predicated region
      $region41: #{tpu_custom_call.1} parent=5 // pred_check
        %p330 = pneg %p329
      $region42: #{tpu_custom_call.1} parent=5 // pred_check_branch
        %332 = sbr.rel (%p330) target = $region44
      $region43: #{tpu_custom_call.1} parent=5 // pred_region
        %s333 = ssub.s32 %s12, 2
        // Predicated region
        $region45: #{tpu_custom_call.1} parent=43 // pred_check
          %p334 = pneg %p119
        $region46: #{tpu_custom_call.1} parent=43 // pred_check_branch
          %336 = sbr.rel (%p334) target = $region48
        $region47: #{tpu_custom_call.1} parent=43 // pred_region
          %p337 = scmp.lt.s32.totalorder %s18, 1
          %s338 = scalar_select %p337, %s18, 1
          %s339 = scalar_lea.vmem %s3, %s338
        $region48: #{tpu_custom_call.1} parent=43 // pred_fallthru
          _
      $region44: #{tpu_custom_call.1} parent=5 // pred_fallthru
        _
    $region6: #{tpu_custom_call.1} parent=1 // loop_footer
      %s16 = sadd.s32 1, %s12
    $region7: #{tpu_custom_call.1} parent=1 // loop_footer_branch
      %11 = sbr.rel target = $region3
    $region8: #{tpu_custom_call.1} parent=1 // loop_exit
      _
    %340 = vsyncpa [#allocation3], 1
    %s341 = scalar_lea.sflag [#allocation3], 1
    %342 = vsyncpa %s341, 1

</llo_original>
